<compile_context>
chip_gen: v7x
topology: tpu7x:2x2x1
jax: 0.10.0
libtpu: 0.0.40
codegen_flags: <defaults>
</compile_context>

<pallas_src>
import functools

import jax
import jax.numpy as jnp
from jax.experimental import pallas as pl
from jax.experimental.pallas import tpu as pltpu


def _dwconv1d_kernel(x_ref, w_ref, b_ref, o_ref, *, t_out, ksize, pad):
    """One (batch, channel-tile) block per grid step.

    x_ref : (1, tC, T)      input slab — channels on sublanes, time on lanes
    w_ref : (tC, K)         per-channel taps
    b_ref : (tC, 1)         per-channel bias
    o_ref : (1, tC, T_out)  output slab
    """
    xv = x_ref[0].astype(jnp.float32)                            # (tC, T)
    if pad > 0:
        halo = jnp.zeros((xv.shape[0], pad), jnp.float32)
        xv = jnp.concatenate([halo, xv, halo], axis=-1)          # (tC, T + 2*pad), in VMEM only
    acc = jnp.zeros((xv.shape[0], t_out), jnp.float32)
    # K is small and static -> unrolled taps; each tap is a lane-shifted slice of the padded
    # value times a per-channel weight column broadcast across lanes (VPU work, DMA-hidden).
    for k in range(ksize):
        acc = acc + xv[:, k:k + t_out] * w_ref[:, k:k + 1].astype(jnp.float32)
    o_ref[0] = (acc + b_ref[...].astype(jnp.float32)).astype(o_ref.dtype)


def _pick_channel_tile(C, T, T_out, itemsize):
    """Largest convenient channel tile: multiple of 8 sublanes, divides C, block <= ~2 MiB."""
    if C % 8 != 0:
        return C                       # single tile; block dims equal full array dims -> legal
    tc = 8
    for cand in (512, 256, 128, 64, 32, 16, 8):
        if C % cand == 0:
            tc = cand
            break
    budget = 2 * 1024 * 1024           # keeps 2x(in+out) double-buffered well under 16 MiB (v5e)
    while (tc > 8 and tc * max(T, T_out) * itemsize > budget
           and (tc // 2) % 8 == 0 and C % (tc // 2) == 0):
        tc //= 2
    return tc


def depthwise_conv1d(x, weight, bias, padding):
    """Equivalent of nn.Conv1d(C, C, K, padding=padding, groups=C)(x).

    x      : (B, C, T)   PyTorch NCW layout, consumed natively (no transposes, no HBM pad)
    weight : (C, 1, K)   PyTorch depthwise conv weight
    bias   : (C,)
    returns: (B, C, T_out) with T_out = T + 2*padding - (K - 1)
    """
    B, C, T = x.shape
    K = weight.shape[-1]
    T_out = T + 2 * padding - (K - 1)
    itemsize = jnp.dtype(x.dtype).itemsize

    tC = _pick_channel_tile(C, T, T_out, itemsize)
    n_ct = C // tC

    w_ck = weight[:, 0, :]             # (C, K)  — tiny, negligible
    b_2d = bias.reshape(C, 1)          # (C, 1)

    kernel = functools.partial(_dwconv1d_kernel, t_out=T_out, ksize=K, pad=padding)

    cost = pl.CostEstimate(
        flops=2 * B * C * T_out * K,
        transcendentals=0,
        bytes_accessed=(x.size + B * C * T_out + w_ck.size + C) * itemsize,
    )

    return pl.pallas_call(
        kernel,
        out_shape=jax.ShapeDtypeStruct((B, C, T_out), x.dtype),
        grid_spec=pltpu.PrefetchScalarGridSpec(
            num_scalar_prefetch=0,
            grid=(B, n_ct),
            in_specs=[
                pl.BlockSpec((1, tC, T), lambda b, c: (b, c, 0)),
                pl.BlockSpec((tC, K), lambda b, c: (c, 0)),
                pl.BlockSpec((tC, 1), lambda b, c: (c, 0)),
            ],
            out_specs=pl.BlockSpec((1, tC, T_out), lambda b, c: (b, c, 0)),
        ),
        compiler_params=pltpu.CompilerParams(
            dimension_semantics=("parallel", "parallel"),
        ),
        cost_estimate=cost,
    )(x, w_ck, b_2d)


if __name__ == "__main__":
    def _ref_conv(x, weight, bias, pad):
        C = x.shape[1]
        return jax.lax.conv_general_dilated(
            x, weight,
            window_strides=(1,),
            padding=[(pad, pad)],
            dimension_numbers=("NCH", "OIH", "NCH"),
            feature_group_count=C,
        ) + bias[None, :, None]

    key = jax.random.PRNGKey(0)
    cases = [
        # (B, C, T, K, pad)
        (2, 64, 16, 3, 1),    # small "same" depthwise conv (single channel tile)
        (2, 48, 40, 5, 2),    # multi channel-tile, wider kernel
    ]
    for (B, C, T, K, PAD) in cases:
        key, kx, kw, kb = jax.random.split(key, 4)
        x = jax.random.normal(kx, (B, C, T), dtype=jnp.float32)

        # Deterministic param init mimicking PyTorch Conv1d: U(-sqrt(k), sqrt(k)), k = 1/K depthwise.
        bound = 1.0 / (K ** 0.5)
        weight = jax.random.uniform(kw, (C, 1, K), jnp.float32, -bound, bound)
        bias = jax.random.uniform(kb, (C,), jnp.float32, -bound, bound)

        y = jax.block_until_ready(depthwise_conv1d(x, weight, bias, PAD))
        y_ref = _ref_conv(x, weight, bias, PAD)

        assert y.shape == y_ref.shape, (y.shape, y_ref.shape)
        max_err = float(jnp.max(jnp.abs(y - y_ref)))
        assert jnp.allclose(y, y_ref, atol=1e-5, rtol=1e-5), max_err

    print("KERNEL_OK")
</pallas_src>

<mosaic_0001>
module attributes {stable_mosaic.version = 11 : i64} {
  func.func @_dwconv1d_kernel(%arg0: i32, %arg1: i32, %arg2: memref<1x64x16xf32, #tpu.memory_space<vmem>>, %arg3: memref<64x3xf32, #tpu.memory_space<vmem>>, %arg4: memref<64x1xf32, #tpu.memory_space<vmem>>, %arg5: memref<1x64x16xf32, #tpu.memory_space<vmem>>) attributes {dimension_semantics = [#tpu.dimension_semantics<parallel>, #tpu.dimension_semantics<parallel>], iteration_bounds = array<i64: 2, 1>, scalar_prefetch = 0 : i64, scratch_operands = 0 : i64, tpu.core_type = #tpu.core_type<tc>, window_params = [{transform_indices = @transform_0, window_bounds = array<i64: 1, 64, 16>}, {transform_indices = @transform_1, window_bounds = array<i64: 64, 3>}, {transform_indices = @transform_2, window_bounds = array<i64: 64, 1>}, {transform_indices = @transform_3, window_bounds = array<i64: 1, 64, 16>}]} {
    %c0 = arith.constant 0 : index
    %c0_0 = arith.constant 0 : index
    %c0_1 = arith.constant 0 : index
    %0 = vector.load %arg2[%c0, %c0_0, %c0_1] : memref<1x64x16xf32, #tpu.memory_space<vmem>>, vector<1x64x16xf32>
    %1 = vector.shape_cast %0 : vector<1x64x16xf32> to vector<64x16xf32>
    %cst = arith.constant 0.000000e+00 : f32
    %2 = vector.broadcast %cst : f32 to vector<64x1xf32>
    %3 = tpu.concatenate %2, %1, %2 in 1 : vector<64x1xf32>, vector<64x16xf32>, vector<64x1xf32> -> vector<64x18xf32>
    %cst_2 = arith.constant 0.000000e+00 : f32
    %4 = vector.broadcast %cst_2 : f32 to vector<64x16xf32>
    %5 = vector.extract_strided_slice %3 {offsets = [0, 0], sizes = [64, 16], strides = [1, 1]} : vector<64x18xf32> to vector<64x16xf32>
    %c0_3 = arith.constant 0 : index
    %c0_4 = arith.constant 0 : index
    %6 = vector.load %arg3[%c0_3, %c0_4] : memref<64x3xf32, #tpu.memory_space<vmem>>, vector<64x1xf32>
    %7 = vector.broadcast %6 : vector<64x1xf32> to vector<64x16xf32>
    %8 = arith.mulf %5, %7 : vector<64x16xf32>
    %9 = arith.addf %4, %8 : vector<64x16xf32>
    %10 = vector.extract_strided_slice %3 {offsets = [0, 1], sizes = [64, 16], strides = [1, 1]} : vector<64x18xf32> to vector<64x16xf32>
    %c0_5 = arith.constant 0 : index
    %c1 = arith.constant 1 : index
    %11 = vector.load %arg3[%c0_5, %c1] : memref<64x3xf32, #tpu.memory_space<vmem>>, vector<64x1xf32>
    %12 = vector.broadcast %11 : vector<64x1xf32> to vector<64x16xf32>
    %13 = arith.mulf %10, %12 : vector<64x16xf32>
    %14 = arith.addf %9, %13 : vector<64x16xf32>
    %15 = vector.extract_strided_slice %3 {offsets = [0, 2], sizes = [64, 16], strides = [1, 1]} : vector<64x18xf32> to vector<64x16xf32>
    %c0_6 = arith.constant 0 : index
    %c2 = arith.constant 2 : index
    %16 = vector.load %arg3[%c0_6, %c2] : memref<64x3xf32, #tpu.memory_space<vmem>>, vector<64x1xf32>
    %17 = vector.broadcast %16 : vector<64x1xf32> to vector<64x16xf32>
    %18 = arith.mulf %15, %17 : vector<64x16xf32>
    %19 = arith.addf %14, %18 : vector<64x16xf32>
    %c0_7 = arith.constant 0 : index
    %c0_8 = arith.constant 0 : index
    %20 = vector.load %arg4[%c0_7, %c0_8] : memref<64x1xf32, #tpu.memory_space<vmem>>, vector<64x1xf32>
    %21 = vector.broadcast %20 : vector<64x1xf32> to vector<64x16xf32>
    %22 = arith.addf %19, %21 : vector<64x16xf32>
    %c0_9 = arith.constant 0 : index
    %c0_10 = arith.constant 0 : index
    %c0_11 = arith.constant 0 : index
    %23 = vector.load %arg5[%c0_9, %c0_10, %c0_11] : memref<1x64x16xf32, #tpu.memory_space<vmem>>, vector<1x64x16xf32>
    %24 = vector.shape_cast %23 : vector<1x64x16xf32> to vector<64x16xf32>
    %25 = vector.shape_cast %22 : vector<64x16xf32> to vector<1x64x16xf32>
    tpu.vector_store %arg5[%c0_9, %c0_10, %c0_11], %25 {strides = array<i32>} : memref<1x64x16xf32, #tpu.memory_space<vmem>>, vector<1x64x16xf32>,
    return
  }
  func.func @transform_0(%arg0: i32, %arg1: i32) -> (i32, i32, i32) {
    %c0_i32 = arith.constant 0 : i32
    %c0_i32_0 = arith.constant 0 : i32
    return %arg0, %arg1, %c0_i32 : i32, i32, i32
  }
  func.func @transform_1(%arg0: i32, %arg1: i32) -> (i32, i32) {
    %c0_i32 = arith.constant 0 : i32
    %c0_i32_0 = arith.constant 0 : i32
    return %arg1, %c0_i32 : i32, i32
  }
  func.func @transform_2(%arg0: i32, %arg1: i32) -> (i32, i32) {
    %c0_i32 = arith.constant 0 : i32
    %c0_i32_0 = arith.constant 0 : i32
    return %arg1, %c0_i32 : i32, i32
  }
  func.func @transform_3(%arg0: i32, %arg1: i32) -> (i32, i32, i32) {
    %c0_i32 = arith.constant 0 : i32
    %c0_i32_0 = arith.constant 0 : i32
    return %arg0, %arg1, %c0_i32 : i32, i32, i32
  }
}

</mosaic_0001>

<llo_original>
// kernel: tpu_custom_call.1
$region0: #{tpu_custom_call.1}
  #allocation0 [shape = 'u32[]', space=smem, size = 0x4, offset = 0x4, fixed_abs, tag = 'smem constant byte address 0x4 - core index']
  #allocation1 [shape = 'u32[144,128]{1,0:T(1,128)}', space=vmem, size = 0x12000, scoped, tag = 'internal scratch']
  %s0 = inlined_call_operand.vmem [shape: f32[2,64,16], index: 0, kind: input, shape index: {}]
  %s1 = inlined_call_operand.vmem [shape: f32[64,3], index: 1, kind: input, shape index: {}]
  %s2 = inlined_call_operand.vmem [shape: f32[64,1], index: 2, kind: input, shape index: {}]
  %s3 = inlined_call_operand.vmem [shape: f32[2,64,16], index: 3, kind: output, shape index: {}]
  %s4 = sld [smem:[#allocation0]]
  $region45: #{tpu_custom_call.1} parent=0
    _
  %s6 = ssub.s32 1, %s4
  %s7 = scalar_select 0, %s6, %s4
  loop: start=0, step=1, limit=4
  $region2: #{tpu_custom_call.1} parent=0 // loop_pre_header
    _
  $region3: #{tpu_custom_call.1} parent=0 // loop_header
    %s9 = sphi 0, %s13
    %p10 = scmp.ge.s32.totalorder %s9, 4
    %s16 = sphi 0, %s28
    %s17 = sphi 0, %s24
    %s18 = sphi 0, %s16
    %s19 = sphi 0, %s17
    %s20 = sphi 0, %s18
    %s21 = sphi 0, %s19
    %s33 = sphi 0, %s35
    %s36 = sphi 0, %s33
    %s37 = sphi 0, %s36
    %s53 = sphi 0, %s37
    %s59 = sphi 0, %s61
    %s62 = sphi 0, %s59
    %s63 = sphi 0, %s62
    %s79 = sphi 0, %s63
    %s85 = sphi 0, %s87
    %s88 = sphi 0, %s85
    %s89 = sphi 0, %s88
    %s105 = sphi 0, %s89
    %s113 = sphi 0, %s115
    %s116 = sphi 0, %s113
    %s117 = sphi 0, %s116
    %s133 = sphi 0, %s117
  $region4: #{tpu_custom_call.1} parent=0 // loop_header_branch
    %12 = sbr.rel (%p10) target = $region8
  $region5: #{tpu_custom_call.1} parent=0 // loop_body
    %s14 = ssub.s32 %s9, 1
    %s15 = ssub.s32 %s9, 2
    %s22 = sadd.s32 1, %s17
    %p23 = scmp.ge.s32.totalorder %s22, 1
    %s24 = scalar_select %p23, 0, %s22
    %s25 = sadd.s32 1, %s16
    %s26 = scalar_select %p23, %s25, %s16
    %p27 = scmp.ge.s32.totalorder %s26, 2
    %s28 = scalar_select %p27, 0, %s26
    %s29 = ssub.s32 %s16, %s28
    %s30 = ssub.s32 %s17, %s24
    %s31 = sor.u32 %s29, %s30
    %p32 = scmp.eq.s32.totalorder %s31, 0
    %s34 = sadd.s32 %s33, 1
    %s35 = scalar_select %p32, %s33, %s34
    %p38 = pneg %p32
    %p39 = scmp.eq.s32.totalorder %s9, 1
    %p40 = por %p38, %p39
    %p41 = scmp.ne.s32.totalorder %s33, %s36
    %p42 = scmp.eq.s32.totalorder %s9, 0
    %p43 = por %p41, %p42
    %p44 = scmp.ne.s32.totalorder %s33, %s36
    %p45 = scmp.eq.s32.totalorder %s14, 1
    %p46 = por %p44, %p45
    %p47 = scmp.ne.s32.totalorder %s36, %s37
    %p48 = scmp.eq.s32.totalorder %s14, 0
    %p49 = por %p47, %p48
    %p50 = scmp.ne.s32.totalorder %s36, %s37
    %p51 = scmp.eq.s32.totalorder %s15, 1
    %p52 = por %p50, %p51
    %p54 = scmp.ne.s32.totalorder %s37, %s53
    %p55 = scmp.eq.s32.totalorder %s15, 0
    %p56 = por %p54, %p55
    %s57 = ssub.s32 %s17, %s24
    %p58 = scmp.eq.s32.totalorder %s57, 0
    %s60 = sadd.s32 %s59, 1
    %s61 = scalar_select %p58, %s59, %s60
    %p64 = pneg %p58
    %p65 = scmp.eq.s32.totalorder %s9, 1
    %p66 = por %p64, %p65
    %p67 = scmp.ne.s32.totalorder %s59, %s62
    %p68 = scmp.eq.s32.totalorder %s9, 0
    %p69 = por %p67, %p68
    %p70 = scmp.ne.s32.totalorder %s59, %s62
    %p71 = scmp.eq.s32.totalorder %s14, 1
    %p72 = por %p70, %p71
    %p73 = scmp.ne.s32.totalorder %s62, %s63
    %p74 = scmp.eq.s32.totalorder %s14, 0
    %p75 = por %p73, %p74
    %p76 = scmp.ne.s32.totalorder %s62, %s63
    %p77 = scmp.eq.s32.totalorder %s15, 1
    %p78 = por %p76, %p77
    %p80 = scmp.ne.s32.totalorder %s63, %s79
    %p81 = scmp.eq.s32.totalorder %s15, 0
    %p82 = por %p80, %p81
    %s83 = ssub.s32 %s17, %s24
    %p84 = scmp.eq.s32.totalorder %s83, 0
    %s86 = sadd.s32 %s85, 1
    %s87 = scalar_select %p84, %s85, %s86
    %p90 = pneg %p84
    %p91 = scmp.eq.s32.totalorder %s9, 1
    %p92 = por %p90, %p91
    %p93 = scmp.ne.s32.totalorder %s85, %s88
    %p94 = scmp.eq.s32.totalorder %s9, 0
    %p95 = por %p93, %p94
    %p96 = scmp.ne.s32.totalorder %s85, %s88
    %p97 = scmp.eq.s32.totalorder %s14, 1
    %p98 = por %p96, %p97
    %p99 = scmp.ne.s32.totalorder %s88, %s89
    %p100 = scmp.eq.s32.totalorder %s14, 0
    %p101 = por %p99, %p100
    %p102 = scmp.ne.s32.totalorder %s88, %s89
    %p103 = scmp.eq.s32.totalorder %s15, 1
    %p104 = por %p102, %p103
    %p106 = scmp.ne.s32.totalorder %s89, %s105
    %p107 = scmp.eq.s32.totalorder %s15, 0
    %p108 = por %p106, %p107
    %s109 = ssub.s32 %s16, %s28
    %s110 = ssub.s32 %s17, %s24
    %s111 = sor.u32 %s109, %s110
    %p112 = scmp.eq.s32.totalorder %s111, 0
    %s114 = sadd.s32 %s113, 1
    %s115 = scalar_select %p112, %s113, %s114
    %p118 = pneg %p112
    %p119 = scmp.eq.s32.totalorder %s9, 1
    %p120 = por %p118, %p119
    %p121 = scmp.ne.s32.totalorder %s113, %s116
    %p122 = scmp.eq.s32.totalorder %s9, 0
    %p123 = por %p121, %p122
    %p124 = scmp.ne.s32.totalorder %s113, %s116
    %p125 = scmp.eq.s32.totalorder %s14, 1
    %p126 = por %p124, %p125
    %p127 = scmp.ne.s32.totalorder %s116, %s117
    %p128 = scmp.eq.s32.totalorder %s14, 0
    %p129 = por %p127, %p128
    %p130 = scmp.ne.s32.totalorder %s116, %s117
    %p131 = scmp.eq.s32.totalorder %s15, 1
    %p132 = por %p130, %p131
    %p134 = scmp.ne.s32.totalorder %s117, %s133
    %p135 = scmp.eq.s32.totalorder %s15, 0
    %p136 = por %p134, %p135
    %p137 = scmp.le.s32.totalorder 1, %s9
    %p138 = scmp.lt.s32.totalorder %s9, 3
    %p139 = pnand %p137, %p138
    %p140 = pneg %p139
    // Predicated region
    $region9: #{tpu_custom_call.1} parent=5 // pred_check
      _
    $region10: #{tpu_custom_call.1} parent=5 // pred_check_branch
      %142 = sbr.rel (%p139) target = $region12
    $region11: #{tpu_custom_call.1} parent=5 // pred_region
      %s143 = ssub.s32 %s9, 1
      // Predicated region
      $region13: #{tpu_custom_call.1} parent=11 // pred_check
        %p144 = pneg %p75
      $region14: #{tpu_custom_call.1} parent=11 // pred_check_branch
        %146 = sbr.rel (%p144) target = $region16
      $region15: #{tpu_custom_call.1} parent=11 // pred_region
        %s147 = smul.u32 8, %s19
        %p148 = scmp.lt.s32.totalorder %s147, 7
        %s149 = scalar_select %p148, %s147, 7
        %s150 = smul.addr %s149, 8
        %s151 = scalar_lea.vmem %s1, %s150
        %s152 = smul.u32 8, %s19
      $region16: #{tpu_custom_call.1} parent=11 // pred_fallthru
        _
      // Predicated region
      $region17: #{tpu_custom_call.1} parent=11 // pred_check
        %p153 = pneg %p101
      $region18: #{tpu_custom_call.1} parent=11 // pred_check_branch
        %155 = sbr.rel (%p153) target = $region20
      $region19: #{tpu_custom_call.1} parent=11 // pred_region
        %s156 = smul.u32 8, %s19
        %p157 = scmp.lt.s32.totalorder %s156, 7
        %s158 = scalar_select %p157, %s156, 7
        %s159 = smul.addr %s158, 8
        %s160 = scalar_lea.vmem %s2, %s159
        %s161 = smul.u32 8, %s19
      $region20: #{tpu_custom_call.1} parent=11 // pred_fallthru
        _
    $region12: #{tpu_custom_call.1} parent=5 // pred_fallthru
      _
    %p162 = scmp.lt.s32.totalorder %s9, 2
    // Predicated region
    $region21: #{tpu_custom_call.1} parent=5 // pred_check
      %p163 = pneg %p162
    $region22: #{tpu_custom_call.1} parent=5 // pred_check_branch
      %165 = sbr.rel (%p163) target = $region24
    $region23: #{tpu_custom_call.1} parent=5 // pred_region
      // Predicated region
      $region25: #{tpu_custom_call.1} parent=23 // pred_check
        %p166 = pneg %p43
      $region26: #{tpu_custom_call.1} parent=23 // pred_check_branch
        %168 = sbr.rel (%p166) target = $region28
      $region27: #{tpu_custom_call.1} parent=23 // pred_region
        %s169 = smul.u32 8, %s17
        %p170 = scmp.lt.s32.totalorder %s16, 1
        %s171 = scalar_select %p170, %s16, 1
        %p172 = scmp.lt.s32.totalorder %s169, 7
        %s173 = scalar_select %p172, %s169, 7
        %s174 = smul.addr %s171, 8
        %s175 = sadd.s32 %s173, %s174
        %s176 = smul.addr %s175, 8
        %s177 = scalar_lea.vmem %s0, %s176
        %s178 = smul.u32 8, %s17
      $region28: #{tpu_custom_call.1} parent=23 // pred_fallthru
        _
    $region24: #{tpu_custom_call.1} parent=5 // pred_fallthru
      _
    %p179 = scmp.le.s32.totalorder 1, %s9
    %p180 = scmp.lt.s32.totalorder %s9, 3
    %p181 = pnand %p179, %p180
    %p182 = pneg %p181
    // Predicated region
    $region29: #{tpu_custom_call.1} parent=5 // pred_check
      _
    $region30: #{tpu_custom_call.1} parent=5 // pred_check_branch
      %184 = sbr.rel (%p181) target = $region32
    $region31: #{tpu_custom_call.1} parent=5 // pred_region
      %s185 = ssub.s32 %s9, 1
      %s186 = smul.u32 8, %s19
      %p187 = scmp.lt.s32.totalorder %s18, 1
      %s188 = scalar_select %p187, %s18, 1
      %p189 = scmp.lt.s32.totalorder %s186, 7
      %s190 = scalar_select %p189, %s186, 7
      %s191 = smul.addr %s188, 8
      %s192 = sadd.s32 %s190, %s191
      %s193 = smul.addr %s192, 8
      %s194 = scalar_lea.vmem %s0, %s193
      %p195 = pneg %p49
      %p196 = pneg %p46
      %s197 = smul.u32 8, %s19
      %p198 = scmp.lt.s32.totalorder %s197, 7
      %s199 = scalar_select %p198, %s197, 7
      %s200 = smul.addr %s199, 8
      %s201 = scalar_lea.vmem %s1, %s200
      %p202 = pneg %p75
      %p203 = pneg %p72
      %s204 = smul.u32 8, %s19
      %p205 = scmp.lt.s32.totalorder %s204, 7
      %s206 = scalar_select %p205, %s204, 7
      %s207 = smul.addr %s206, 8
      %s208 = scalar_lea.vmem %s2, %s207
      %p209 = pneg %p101
      %p210 = pneg %p98
      %p211 = pneg %p129
      %p212 = pneg %p126
      %s213 = smul.u32 8, %s19
      %p214 = scmp.lt.s32.totalorder %s18, 1
      %s215 = scalar_select %p214, %s18, 1
      %p216 = scmp.lt.s32.totalorder %s213, 7
      %s217 = scalar_select %p216, %s213, 7
      %s218 = smul.addr %s215, 8
      %s219 = sadd.s32 %s217, %s218
      %s220 = smul.addr %s219, 8
      %s221 = scalar_lea.vmem %s3, %s220
      %s222 = smul.u32 8, %s19
      %p223 = scmp.lt.s32.totalorder %s18, 1
      %s224 = scalar_select %p223, %s18, 1
      %p225 = scmp.lt.s32.totalorder %s222, 7
      %s226 = scalar_select %p225, %s222, 7
      %s227 = smul.addr %s224, 8
      %s228 = sadd.s32 %s226, %s227
      %s229 = smul.addr %s228, 8
      %s230 = scalar_lea.vmem %s0, %s229
      %s231 = smul.u32 8, %s19
      %s232 = smul.u32 8, %s19
      %p233 = scmp.lt.s32.totalorder %s232, 7
      %s234 = scalar_select %p233, %s232, 7
      %s235 = smul.addr %s234, 8
      %s236 = scalar_lea.vmem %s1, %s235
      %s237 = smul.u32 8, %s19
      %s238 = smul.u32 8, %s19
      %p239 = scmp.lt.s32.totalorder %s238, 7
      %s240 = scalar_select %p239, %s238, 7
      %s241 = smul.addr %s240, 8
      %s242 = scalar_lea.vmem %s2, %s241
      %s243 = smul.u32 8, %s19
      %s244 = smul.u32 8, %s19
      %p245 = scmp.lt.s32.totalorder %s18, 1
      %s246 = scalar_select %p245, %s18, 1
      %p247 = scmp.lt.s32.totalorder %s244, 7
      %s248 = scalar_select %p247, %s244, 7
      %s249 = smul.addr %s246, 8
      %s250 = sadd.s32 %s248, %s249
      %s251 = smul.addr %s250, 8
      %s252 = scalar_lea.vmem %s3, %s251
      %s253 = smul.u32 8, %s19
      %v254 = vld [vmem:[%s230] sm:$0xff]
      %v255 = vld [vmem:[%s230 + $0x8] sm:$0xff]
      %v256 = vld [vmem:[%s230 + $0x10] sm:$0xff]
      %v257 = vld [vmem:[%s230 + $0x18] sm:$0xff]
      %v258 = vld [vmem:[%s230 + $0x20] sm:$0xff]
      %v259 = vld [vmem:[%s230 + $0x28] sm:$0xff]
      %v260 = vld [vmem:[%s230 + $0x30] sm:$0xff]
      %v261 = vld [vmem:[%s230 + $0x38] sm:$0xff]
      %270 = vrot.lane.b32.xlu0 %v254, 1
      %v271 = vpop.permute.xlu0 %270
      %272 = vrot.lane.b32.xlu0 %v255, 1
      %v273 = vpop.permute.xlu0 %272
      %274 = vrot.lane.b32.xlu0 %v256, 1
      %v275 = vpop.permute.xlu0 %274
      %276 = vrot.lane.b32.xlu0 %v257, 1
      %v277 = vpop.permute.xlu0 %276
      %278 = vrot.lane.b32.xlu0 %v258, 1
      %v279 = vpop.permute.xlu0 %278
      %280 = vrot.lane.b32.xlu0 %v259, 1
      %v281 = vpop.permute.xlu0 %280
      %282 = vrot.lane.b32.xlu0 %v260, 1
      %v283 = vpop.permute.xlu0 %282
      %284 = vrot.lane.b32.xlu0 %v261, 1
      %v285 = vpop.permute.xlu0 %284
      %vm294 = vcmask 7168
      %v295 = vsel %vm294, 0.0, %v271
      %v296 = vsel %vm294, 0.0, %v273
      %v297 = vsel %vm294, 0.0, %v275
      %v298 = vsel %vm294, 0.0, %v277
      %v299 = vsel %vm294, 0.0, %v279
      %v300 = vsel %vm294, 0.0, %v281
      %v301 = vsel %vm294, 0.0, %v283
      %v302 = vsel %vm294, 0.0, %v285
      %vm303 = vcmask 138240
      %v304 = vsel %vm303, %v295, 0.0
      %v305 = vsel %vm303, %v296, 0.0
      %v306 = vsel %vm303, %v297, 0.0
      %v307 = vsel %vm303, %v298, 0.0
      %v308 = vsel %vm303, %v299, 0.0
      %v309 = vsel %vm303, %v300, 0.0
      %v310 = vsel %vm303, %v301, 0.0
      %v311 = vsel %vm303, %v302, 0.0
      %v312 = vld [vmem:[%s236] sm:$0xff]
      %v313 = vld [vmem:[%s236 + $0x8] sm:$0xff]
      %v314 = vld [vmem:[%s236 + $0x10] sm:$0xff]
      %v315 = vld [vmem:[%s236 + $0x18] sm:$0xff]
      %v316 = vld [vmem:[%s236 + $0x20] sm:$0xff]
      %v317 = vld [vmem:[%s236 + $0x28] sm:$0xff]
      %v318 = vld [vmem:[%s236 + $0x30] sm:$0xff]
      %v319 = vld [vmem:[%s236 + $0x38] sm:$0xff]
      %321 = vset.pattern.permute.xlu0 0
      %322 = vperm.xlu0 %321, %v312
      %v323 = vpop.permute.xlu0 %322
      %326 = vset.pattern.permute.xlu0 0
      %327 = vperm.xlu0 %326, %v313
      %v328 = vpop.permute.xlu0 %327
      %331 = vset.pattern.permute.xlu0 0
      %332 = vperm.xlu0 %331, %v314
      %v333 = vpop.permute.xlu0 %332
      %336 = vset.pattern.permute.xlu0 0
      %337 = vperm.xlu0 %336, %v315
      %v338 = vpop.permute.xlu0 %337
      %341 = vset.pattern.permute.xlu0 0
      %342 = vperm.xlu0 %341, %v316
      %v343 = vpop.permute.xlu0 %342
      %346 = vset.pattern.permute.xlu0 0
      %347 = vperm.xlu0 %346, %v317
      %v348 = vpop.permute.xlu0 %347
      %351 = vset.pattern.permute.xlu0 0
      %352 = vperm.xlu0 %351, %v318
      %v353 = vpop.permute.xlu0 %352
      %356 = vset.pattern.permute.xlu0 0
      %357 = vperm.xlu0 %356, %v319
      %v358 = vpop.permute.xlu0 %357
      %v360 = vmul.f32 %v304, %v323
      %v361 = vmul.f32 %v305, %v328
      %v362 = vmul.f32 %v306, %v333
      %v363 = vmul.f32 %v307, %v338
      %v364 = vmul.f32 %v308, %v343
      %v365 = vmul.f32 %v309, %v348
      %v366 = vmul.f32 %v310, %v353
      %v367 = vmul.f32 %v311, %v358
      %v368 = vadd.f32 %v360, 0.0
      %v369 = vadd.f32 %v361, 0.0
      %v370 = vadd.f32 %v362, 0.0
      %v371 = vadd.f32 %v363, 0.0
      %v372 = vadd.f32 %v364, 0.0
      %v373 = vadd.f32 %v365, 0.0
      %v374 = vadd.f32 %v366, 0.0
      %v375 = vadd.f32 %v367, 0.0
      %376 = vset.pattern.permute.xlu0 1
      %377 = vperm.xlu0 %376, %v312
      %v378 = vpop.permute.xlu0 %377
      %380 = vset.pattern.permute.xlu0 1
      %381 = vperm.xlu0 %380, %v313
      %v382 = vpop.permute.xlu0 %381
      %384 = vset.pattern.permute.xlu0 1
      %385 = vperm.xlu0 %384, %v314
      %v386 = vpop.permute.xlu0 %385
      %388 = vset.pattern.permute.xlu0 1
      %389 = vperm.xlu0 %388, %v315
      %v390 = vpop.permute.xlu0 %389
      %392 = vset.pattern.permute.xlu0 1
      %393 = vperm.xlu0 %392, %v316
      %v394 = vpop.permute.xlu0 %393
      %396 = vset.pattern.permute.xlu0 1
      %397 = vperm.xlu0 %396, %v317
      %v398 = vpop.permute.xlu0 %397
      %400 = vset.pattern.permute.xlu0 1
      %401 = vperm.xlu0 %400, %v318
      %v402 = vpop.permute.xlu0 %401
      %404 = vset.pattern.permute.xlu0 1
      %405 = vperm.xlu0 %404, %v319
      %v406 = vpop.permute.xlu0 %405
      %v408 = vmul.f32 %v304, %v378
      %v409 = vmul.f32 %v305, %v382
      %v410 = vmul.f32 %v306, %v386
      %v411 = vmul.f32 %v307, %v390
      %v412 = vmul.f32 %v308, %v394
      %v413 = vmul.f32 %v309, %v398
      %v414 = vmul.f32 %v310, %v402
      %v415 = vmul.f32 %v311, %v406
      %424 = vrot.lane.b32.xlu0 %v408, 127
      %v425 = vpop.permute.xlu0 %424
      %426 = vrot.lane.b32.xlu0 %v409, 127
      %v427 = vpop.permute.xlu0 %426
      %428 = vrot.lane.b32.xlu0 %v410, 127
      %v429 = vpop.permute.xlu0 %428
      %430 = vrot.lane.b32.xlu0 %v411, 127
      %v431 = vpop.permute.xlu0 %430
      %432 = vrot.lane.b32.xlu0 %v412, 127
      %v433 = vpop.permute.xlu0 %432
      %434 = vrot.lane.b32.xlu0 %v413, 127
      %v435 = vpop.permute.xlu0 %434
      %436 = vrot.lane.b32.xlu0 %v414, 127
      %v437 = vpop.permute.xlu0 %436
      %438 = vrot.lane.b32.xlu0 %v415, 127
      %v439 = vpop.permute.xlu0 %438
      %v448 = vadd.f32 %v368, %v425
      %v449 = vadd.f32 %v369, %v427
      %v450 = vadd.f32 %v370, %v429
      %v451 = vadd.f32 %v371, %v431
      %v452 = vadd.f32 %v372, %v433
      %v453 = vadd.f32 %v373, %v435
      %v454 = vadd.f32 %v374, %v437
      %v455 = vadd.f32 %v375, %v439
      %456 = vset.pattern.permute.xlu0 2
      %457 = vperm.xlu0 %456, %v312
      %v458 = vpop.permute.xlu0 %457
      %460 = vset.pattern.permute.xlu0 2
      %461 = vperm.xlu0 %460, %v313
      %v462 = vpop.permute.xlu0 %461
      %464 = vset.pattern.permute.xlu0 2
      %465 = vperm.xlu0 %464, %v314
      %v466 = vpop.permute.xlu0 %465
      %468 = vset.pattern.permute.xlu0 2
      %469 = vperm.xlu0 %468, %v315
      %v470 = vpop.permute.xlu0 %469
      %472 = vset.pattern.permute.xlu0 2
      %473 = vperm.xlu0 %472, %v316
      %v474 = vpop.permute.xlu0 %473
      %476 = vset.pattern.permute.xlu0 2
      %477 = vperm.xlu0 %476, %v317
      %v478 = vpop.permute.xlu0 %477
      %480 = vset.pattern.permute.xlu0 2
      %481 = vperm.xlu0 %480, %v318
      %v482 = vpop.permute.xlu0 %481
      %484 = vset.pattern.permute.xlu0 2
      %485 = vperm.xlu0 %484, %v319
      %v486 = vpop.permute.xlu0 %485
      %v488 = vmul.f32 %v304, %v458
      %v489 = vmul.f32 %v305, %v462
      %v490 = vmul.f32 %v306, %v466
      %v491 = vmul.f32 %v307, %v470
      %v492 = vmul.f32 %v308, %v474
      %v493 = vmul.f32 %v309, %v478
      %v494 = vmul.f32 %v310, %v482
      %v495 = vmul.f32 %v311, %v486
      %504 = vrot.lane.b32.xlu0 %v488, 126
      %v505 = vpop.permute.xlu0 %504
      %506 = vrot.lane.b32.xlu0 %v489, 126
      %v507 = vpop.permute.xlu0 %506
      %508 = vrot.lane.b32.xlu0 %v490, 126
      %v509 = vpop.permute.xlu0 %508
      %510 = vrot.lane.b32.xlu0 %v491, 126
      %v511 = vpop.permute.xlu0 %510
      %512 = vrot.lane.b32.xlu0 %v492, 126
      %v513 = vpop.permute.xlu0 %512
      %514 = vrot.lane.b32.xlu0 %v493, 126
      %v515 = vpop.permute.xlu0 %514
      %516 = vrot.lane.b32.xlu0 %v494, 126
      %v517 = vpop.permute.xlu0 %516
      %518 = vrot.lane.b32.xlu0 %v495, 126
      %v519 = vpop.permute.xlu0 %518
      %v528 = vadd.f32 %v448, %v505
      %v529 = vadd.f32 %v449, %v507
      %v530 = vadd.f32 %v450, %v509
      %v531 = vadd.f32 %v451, %v511
      %v532 = vadd.f32 %v452, %v513
      %v533 = vadd.f32 %v453, %v515
      %v534 = vadd.f32 %v454, %v517
      %v535 = vadd.f32 %v455, %v519
      %v536 = vld [vmem:[%s242] sm:$0xff]
      %v537 = vld [vmem:[%s242 + $0x8] sm:$0xff]
      %v538 = vld [vmem:[%s242 + $0x10] sm:$0xff]
      %v539 = vld [vmem:[%s242 + $0x18] sm:$0xff]
      %v540 = vld [vmem:[%s242 + $0x20] sm:$0xff]
      %v541 = vld [vmem:[%s242 + $0x28] sm:$0xff]
      %v542 = vld [vmem:[%s242 + $0x30] sm:$0xff]
      %v543 = vld [vmem:[%s242 + $0x38] sm:$0xff]
      %545 = vset.pattern.permute.xlu0 0
      %546 = vperm.xlu0 %545, %v536
      %v547 = vpop.permute.xlu0 %546
      %550 = vset.pattern.permute.xlu0 0
      %551 = vperm.xlu0 %550, %v537
      %v552 = vpop.permute.xlu0 %551
      %555 = vset.pattern.permute.xlu0 0
      %556 = vperm.xlu0 %555, %v538
      %v557 = vpop.permute.xlu0 %556
      %560 = vset.pattern.permute.xlu0 0
      %561 = vperm.xlu0 %560, %v539
      %v562 = vpop.permute.xlu0 %561
      %565 = vset.pattern.permute.xlu0 0
      %566 = vperm.xlu0 %565, %v540
      %v567 = vpop.permute.xlu0 %566
      %570 = vset.pattern.permute.xlu0 0
      %571 = vperm.xlu0 %570, %v541
      %v572 = vpop.permute.xlu0 %571
      %575 = vset.pattern.permute.xlu0 0
      %576 = vperm.xlu0 %575, %v542
      %v577 = vpop.permute.xlu0 %576
      %580 = vset.pattern.permute.xlu0 0
      %581 = vperm.xlu0 %580, %v543
      %v582 = vpop.permute.xlu0 %581
      %v584 = vadd.f32 %v528, %v547
      %v585 = vadd.f32 %v529, %v552
      %v586 = vadd.f32 %v530, %v557
      %v587 = vadd.f32 %v531, %v562
      %v588 = vadd.f32 %v532, %v567
      %v589 = vadd.f32 %v533, %v572
      %v590 = vadd.f32 %v534, %v577
      %v591 = vadd.f32 %v535, %v582
      %vm592 = vcmask 130048
      %593 = vst.msk [vmem:[%s252] sm:$0xff] %vm592, %v584
      %594 = vst.msk [vmem:[%s252 + $0x8] sm:$0xff] %vm592, %v585
      %595 = vst.msk [vmem:[%s252 + $0x10] sm:$0xff] %vm592, %v586
      %596 = vst.msk [vmem:[%s252 + $0x18] sm:$0xff] %vm592, %v587
      %597 = vst.msk [vmem:[%s252 + $0x20] sm:$0xff] %vm592, %v588
      %598 = vst.msk [vmem:[%s252 + $0x28] sm:$0xff] %vm592, %v589
      %599 = vst.msk [vmem:[%s252 + $0x30] sm:$0xff] %vm592, %v590
      %600 = vst.msk [vmem:[%s252 + $0x38] sm:$0xff] %vm592, %v591
      %s601 = smul.u32 8, %s19
      %p602 = scmp.lt.s32.totalorder %s18, 1
      %s603 = scalar_select %p602, %s18, 1
      %p604 = scmp.lt.s32.totalorder %s601, 7
      %s605 = scalar_select %p604, %s601, 7
      %s606 = smul.addr %s603, 8
      %s607 = sadd.s32 %s605, %s606
      %s608 = smul.addr %s607, 8
      %s609 = scalar_lea.vmem %s3, %s608
      // Predicated region
      $region33: #{tpu_custom_call.1} parent=31 // pred_check
        %p610 = pneg %p126
      $region34: #{tpu_custom_call.1} parent=31 // pred_check_branch
        %612 = sbr.rel (%p610) target = $region36
      $region35: #{tpu_custom_call.1} parent=31 // pred_region
        %s613 = smul.u32 8, %s19
      $region36: #{tpu_custom_call.1} parent=31 // pred_fallthru
        _
    $region32: #{tpu_custom_call.1} parent=5 // pred_fallthru
      _
    %p614 = scmp.le.s32.totalorder 2, %s9
    // Predicated region
    $region37: #{tpu_custom_call.1} parent=5 // pred_check
      %p615 = pneg %p614
    $region38: #{tpu_custom_call.1} parent=5 // pred_check_branch
      %617 = sbr.rel (%p615) target = $region40
    $region39: #{tpu_custom_call.1} parent=5 // pred_region
      %s618 = ssub.s32 %s9, 2
      // Predicated region
      $region41: #{tpu_custom_call.1} parent=39 // pred_check
        %p619 = pneg %p132
      $region42: #{tpu_custom_call.1} parent=39 // pred_check_branch
        %621 = sbr.rel (%p619) target = $region44
      $region43: #{tpu_custom_call.1} parent=39 // pred_region
        %s622 = smul.u32 8, %s21
        %p623 = scmp.lt.s32.totalorder %s20, 1
        %s624 = scalar_select %p623, %s20, 1
        %p625 = scmp.lt.s32.totalorder %s622, 7
        %s626 = scalar_select %p625, %s622, 7
        %s627 = smul.addr %s624, 8
        %s628 = sadd.s32 %s626, %s627
        %s629 = smul.addr %s628, 8
        %s630 = scalar_lea.vmem %s3, %s629
      $region44: #{tpu_custom_call.1} parent=39 // pred_fallthru
        _
    $region40: #{tpu_custom_call.1} parent=5 // pred_fallthru
      _
  $region6: #{tpu_custom_call.1} parent=0 // loop_footer
    %s13 = sadd.s32 1, %s9
  $region7: #{tpu_custom_call.1} parent=0 // loop_footer_branch
    %8 = sbr.rel target = $region3
  $region8: #{tpu_custom_call.1} parent=0 // loop_exit
    _

</llo_original>
